<compile_context>
chip_gen: v5e
topology: v5e:2x2
jax: 0.10.0
libtpu: 0.0.40
codegen_flags: <defaults>
</compile_context>

<pallas_src>
import jax
import jax.numpy as jnp
from jax import lax
from jax.experimental import pallas as pl
from jax.experimental.pallas import tpu as pltpu


def mlp_kernel(xT_ref, w23_ref, w14_ref, b_ref, oT_ref):
    """Fused 4-layer MLP on one batch tile, batch on the 128-lane axis.

    xT_ref  : (F, tb)     activations^T (batch on lanes)
    w23_ref : (2, H, H)   stacked [w2; w3], each (out, in)
    w14_ref : (H, F+O)    [w1 columns | w4 columns]
    b_ref   : (H, 4)      [b1 | b2 | b3 | b4 (first O rows, rest zero)]
    oT_ref  : (O, tb)
    """
    Fdim = xT_ref.shape[0]
    Odim = oT_ref.shape[0]

    xT = xT_ref[...]                          # (F, tb)
    w1 = w14_ref[:, :Fdim]                    # (H, F)
    w4 = w14_ref[:, Fdim:Fdim + Odim]         # (H, O)
    b1 = b_ref[:, 0:1]
    b2 = b_ref[:, 1:2]
    b3 = b_ref[:, 2:3]
    b4 = b_ref[:Odim, 3:4]                    # (O, 1)

    # --- hidden1 (K = F).  For F == 1 keep it off the MXU: VPU outer product.
    if Fdim == 1:
        h = w1 * xT + b1                      # (H,1)*(1,tb) -> (H,tb)
    else:
        h = jnp.dot(w1, xT, preferred_element_type=jnp.float32) + b1
    h = jnp.maximum(h, 0.0)

    # --- hidden2 / hidden3: the two real (H,H) @ (H,tb) MXU matmuls.
    h = jnp.dot(w23_ref[0], h, preferred_element_type=jnp.float32) + b2
    h = jnp.maximum(h, 0.0)
    h = jnp.dot(w23_ref[1], h, preferred_element_type=jnp.float32) + b3
    h = jnp.maximum(h, 0.0)

    # --- predict (rows = O).  For O == 1 use VPU multiply + sublane reduce.
    if Odim == 1:
        y = jnp.sum(w4 * h, axis=0, keepdims=True) + b4           # (1, tb)
    else:
        y = lax.dot_general(w4, h, (((0,), (0,)), ((), ())),
                            preferred_element_type=jnp.float32) + b4

    oT_ref[...] = y.astype(oT_ref.dtype)


def _tensorcores_per_chip():
    """2 only on v7x; v5e/v6e have a single TensorCore per chip."""
    try:
        kind = jax.devices()[0].device_kind.lower()
        if "v7" in kind:
            return 2
    except Exception:
        pass
    return 1


def _choose_tile(Bp, n_cores):
    """Bp is a multiple of 128; return a batch tile tb with Bp % tb == 0."""
    if n_cores >= 2 and Bp % 256 == 0 and 256 <= Bp <= 4096:
        return Bp // 2          # two "parallel" steps -> both v7x cores busy
    if Bp <= 2048:
        return Bp               # one grid step; per-step overhead dominates
    tb = 2048                   # big tiles amortize ~0.35 us/step overhead
    while Bp % tb != 0:
        tb -= 128
    return tb


def pack_params(params):
    """Pack the 8 weight/bias arrays into 3 kernel operands (once, host-side)."""
    H = params["w2"].shape[0]
    F = params["w1"].shape[1]
    O = params["w4"].shape[1]
    assert O <= H, "bias packing assumes n_output <= n_hidden"
    w23 = jnp.stack([params["w2"], params["w3"]], axis=0)            # (2,H,H)
    w14 = jnp.concatenate([params["w1"], params["w4"]], axis=1)      # (H,F+O)
    b4col = jnp.zeros((H, 1), jnp.float32).at[:O, :].set(params["b4"])
    bpack = jnp.concatenate(
        [params["b1"], params["b2"], params["b3"], b4col], axis=1)   # (H,4)
    return {"w23": w23, "w14": w14, "b": bpack, "F": F, "H": H, "O": O}


def net_forward(x, packed, *, tb=None):
    """x: (B, F) float32 (torch-style row-major input). Returns (B, O)."""
    B, F = x.shape
    H, O = packed["H"], packed["O"]
    assert F == packed["F"]

    # Pad the batch to a multiple of 128 so it maps cleanly onto the lane axis.
    Bp = ((B + 127) // 128) * 128
    if tb is None:
        tb = _choose_tile(Bp, _tensorcores_per_chip())
    assert Bp % tb == 0 and tb % 128 == 0

    if Bp != B:
        x = jnp.pad(x, ((0, Bp - B), (0, 0)))

    # Batch on lanes: kernel consumes x^T (F, Bp) and produces y^T (O, Bp).
    if F == 1:
        xT = x.reshape(1, Bp)           # pure reshape, no transpose pass
    else:
        # TODO(synk): for F > 1 fold this transpose into the BlockSpec /
        # kernel instead of paying an extra HBM pass here.
        xT = x.T

    def const_spec(shape, single_buffer):
        n = len(shape)
        idx = lambda i: (0,) * n        # grid-invariant block
        if single_buffer:
            return pl.BlockSpec(shape, idx, pipeline_mode=pl.Buffered(1))
        return pl.BlockSpec(shape, idx)

    def run(single_buffer):
        return pl.pallas_call(
            mlp_kernel,
            out_shape=jax.ShapeDtypeStruct((O, Bp), jnp.float32),
            grid_spec=pltpu.PrefetchScalarGridSpec(
                num_scalar_prefetch=0,
                grid=(Bp // tb,),
                in_specs=[
                    pl.BlockSpec((F, tb), lambda i: (0, i)),       # x^T tile
                    const_spec((2, H, H), single_buffer),          # w2 | w3
                    const_spec((H, F + O), single_buffer),         # w1 | w4
                    const_spec((H, 4), single_buffer),             # b1..b4
                ],
                out_specs=pl.BlockSpec((O, tb), lambda i: (0, i)), # lane-dense
            ),
            compiler_params=pltpu.CompilerParams(
                dimension_semantics=("parallel",),
            ),
        )(xT, packed["w23"], packed["w14"], packed["b"])

    try:
        yT = run(True)        # single-buffer the grid-invariant weights/biases
    except Exception:
        yT = run(False)       # fallback if pipeline_mode isn't supported

    if O == 1:
        return yT.reshape(Bp, O)[:B]    # pure reshape + slice
    return yT.T[:B]


def init_params(key, n_feature, n_hidden, n_output):
    """torch.nn.Linear-style U(-1/sqrt(fan_in), 1/sqrt(fan_in)) init.

    Layouts chosen for the batch-on-lanes kernel:
      w1, w2, w3 : (out, in)   -- same as PyTorch
      w4         : (in, out)   -- transposed so the O==1 VPU reduce needs no
                                  in-kernel transpose
      biases     : (out, 1)
    """
    def uniform(k, shape, fan_in):
        bound = 1.0 / (fan_in ** 0.5)
        return jax.random.uniform(k, shape, minval=-bound, maxval=bound,
                                  dtype=jnp.float32)

    ks = jax.random.split(key, 8)
    return {
        "w1": uniform(ks[0], (n_hidden, n_feature), n_feature),
        "b1": uniform(ks[1], (n_hidden, 1), n_feature),
        "w2": uniform(ks[2], (n_hidden, n_hidden), n_hidden),
        "b2": uniform(ks[3], (n_hidden, 1), n_hidden),
        "w3": uniform(ks[4], (n_hidden, n_hidden), n_hidden),
        "b3": uniform(ks[5], (n_hidden, 1), n_hidden),
        "w4": uniform(ks[6], (n_hidden, n_output), n_hidden),
        "b4": uniform(ks[7], (n_output, 1), n_hidden),
    }


def net_forward_ref(x, p):
    """Pure-JAX reference (same math as the PyTorch forward)."""
    h = jnp.maximum(x @ p["w1"].T + p["b1"].T, 0.0)
    h = jnp.maximum(h @ p["w2"].T + p["b2"].T, 0.0)
    h = jnp.maximum(h @ p["w3"].T + p["b3"].T, 0.0)
    return h @ p["w4"] + p["b4"].T


if __name__ == "__main__":
    # Shapes consistent with the tutorial: x = linspace(-1,1,N).unsqueeze(1),
    # i.e. (batch, n_feature=1); n_hidden=32, n_output=1.  Small batch first.
    B, F, H, O = 128, 1, 32, 1
    key = jax.random.PRNGKey(0)

    params = init_params(key, F, H, O)
    packed = pack_params(params)

    x = jnp.linspace(-1.0, 1.0, B, dtype=jnp.float32).reshape(B, F)
    y = jax.block_until_ready(net_forward(x, packed))
    y_ref = net_forward_ref(x, params)
    assert y.shape == (B, O)
    assert jnp.allclose(y, y_ref, atol=1e-5, rtol=1e-5)

    # Tutorial-sized batch (B=1000) exercises batch padding / the larger tile
    # (and the two-step split on v7x).
    x2 = jnp.linspace(-1.0, 1.0, 1000, dtype=jnp.float32).reshape(1000, F)
    y2 = jax.block_until_ready(net_forward(x2, packed))
    assert y2.shape == (1000, O)
    assert jnp.allclose(y2, net_forward_ref(x2, params), atol=1e-5, rtol=1e-5)

    print("KERNEL_OK")
</pallas_src>

<mosaic_0001>
module attributes {stable_mosaic.version = 11 : i64} {
  func.func @mlp_kernel(%arg0: i32, %arg1: memref<1x128xf32, #tpu.memory_space<vmem>>, %arg2: memref<2x32x32xf32, #tpu.memory_space<vmem>>, %arg3: memref<32x2xf32, #tpu.memory_space<vmem>>, %arg4: memref<32x4xf32, #tpu.memory_space<vmem>>, %arg5: memref<1x128xf32, #tpu.memory_space<vmem>>) attributes {dimension_semantics = [#tpu.dimension_semantics<parallel>], iteration_bounds = array<i64: 1>, scalar_prefetch = 0 : i64, scratch_operands = 0 : i64, tpu.core_type = #tpu.core_type<tc>, window_params = [{transform_indices = @transform_0, window_bounds = array<i64: 1, 128>}, {pipeline_mode = #tpu.pipeline_mode<synchronous>, transform_indices = @transform_1, window_bounds = array<i64: 2, 32, 32>}, {pipeline_mode = #tpu.pipeline_mode<synchronous>, transform_indices = @transform_2, window_bounds = array<i64: 32, 2>}, {pipeline_mode = #tpu.pipeline_mode<synchronous>, transform_indices = @transform_3, window_bounds = array<i64: 32, 4>}, {transform_indices = @transform_4, window_bounds = array<i64: 1, 128>}]} {
    %c0 = arith.constant 0 : index
    %c0_0 = arith.constant 0 : index
    %0 = vector.load %arg1[%c0, %c0_0] : memref<1x128xf32, #tpu.memory_space<vmem>>, vector<1x128xf32>
    %c0_1 = arith.constant 0 : index
    %c0_2 = arith.constant 0 : index
    %1 = vector.load %arg3[%c0_1, %c0_2] : memref<32x2xf32, #tpu.memory_space<vmem>>, vector<32x1xf32>
    %c0_3 = arith.constant 0 : index
    %c1 = arith.constant 1 : index
    %2 = vector.load %arg3[%c0_3, %c1] : memref<32x2xf32, #tpu.memory_space<vmem>>, vector<32x1xf32>
    %c0_4 = arith.constant 0 : index
    %c0_5 = arith.constant 0 : index
    %3 = vector.load %arg4[%c0_4, %c0_5] : memref<32x4xf32, #tpu.memory_space<vmem>>, vector<32x1xf32>
    %c0_6 = arith.constant 0 : index
    %c1_7 = arith.constant 1 : index
    %4 = vector.load %arg4[%c0_6, %c1_7] : memref<32x4xf32, #tpu.memory_space<vmem>>, vector<32x1xf32>
    %c0_8 = arith.constant 0 : index
    %c2 = arith.constant 2 : index
    %5 = vector.load %arg4[%c0_8, %c2] : memref<32x4xf32, #tpu.memory_space<vmem>>, vector<32x1xf32>
    %c0_9 = arith.constant 0 : index
    %c3 = arith.constant 3 : index
    %6 = vector.load %arg4[%c0_9, %c3] : memref<32x4xf32, #tpu.memory_space<vmem>>, vector<1x1xf32>
    %7 = vector.broadcast %1 : vector<32x1xf32> to vector<32x128xf32>
    %8 = vector.broadcast %0 : vector<1x128xf32> to vector<32x128xf32>
    %9 = arith.mulf %7, %8 : vector<32x128xf32>
    %10 = vector.broadcast %3 : vector<32x1xf32> to vector<32x128xf32>
    %11 = arith.addf %9, %10 : vector<32x128xf32>
    %cst = arith.constant 0.000000e+00 : f32
    %12 = vector.broadcast %cst : f32 to vector<32x128xf32>
    %13 = arith.maximumf %11, %12 : vector<32x128xf32>
    %c0_10 = arith.constant 0 : index
    %c0_11 = arith.constant 0 : index
    %c0_12 = arith.constant 0 : index
    %14 = vector.load %arg2[%c0_10, %c0_11, %c0_12] : memref<2x32x32xf32, #tpu.memory_space<vmem>>, vector<1x32x32xf32>
    %15 = vector.shape_cast %14 : vector<1x32x32xf32> to vector<32x32xf32>
    %cst_13 = arith.constant dense<0.000000e+00> : vector<32x128xf32>
    %16 = tpu.matmul %15, %13, %cst_13 {dimension_numbers = #tpu.dot_dimension_numbers<[1], [0], [0], [1], [0, 0, 1, 1], [], []>} : vector<32x32xf32>, vector<32x128xf32>, vector<32x128xf32> -> vector<32x128xf32>
    %17 = vector.broadcast %4 : vector<32x1xf32> to vector<32x128xf32>
    %18 = arith.addf %16, %17 : vector<32x128xf32>
    %cst_14 = arith.constant 0.000000e+00 : f32
    %19 = vector.broadcast %cst_14 : f32 to vector<32x128xf32>
    %20 = arith.maximumf %18, %19 : vector<32x128xf32>
    %c1_15 = arith.constant 1 : index
    %c0_16 = arith.constant 0 : index
    %c0_17 = arith.constant 0 : index
    %21 = vector.load %arg2[%c1_15, %c0_16, %c0_17] : memref<2x32x32xf32, #tpu.memory_space<vmem>>, vector<1x32x32xf32>
    %22 = vector.shape_cast %21 : vector<1x32x32xf32> to vector<32x32xf32>
    %cst_18 = arith.constant dense<0.000000e+00> : vector<32x128xf32>
    %23 = tpu.matmul %22, %20, %cst_18 {dimension_numbers = #tpu.dot_dimension_numbers<[1], [0], [0], [1], [0, 0, 1, 1], [], []>} : vector<32x32xf32>, vector<32x128xf32>, vector<32x128xf32> -> vector<32x128xf32>
    %24 = vector.broadcast %5 : vector<32x1xf32> to vector<32x128xf32>
    %25 = arith.addf %23, %24 : vector<32x128xf32>
    %cst_19 = arith.constant 0.000000e+00 : f32
    %26 = vector.broadcast %cst_19 : f32 to vector<32x128xf32>
    %27 = arith.maximumf %25, %26 : vector<32x128xf32>
    %28 = vector.broadcast %2 : vector<32x1xf32> to vector<32x128xf32>
    %29 = arith.mulf %28, %27 : vector<32x128xf32>
    %cst_20 = arith.constant dense<0.000000e+00> : vector<128xf32>
    %30 = vector.multi_reduction <add>, %29, %cst_20 [0] : vector<32x128xf32> to vector<128xf32>
    %31 = vector.shape_cast %30 : vector<128xf32> to vector<1x128xf32>
    %32 = vector.broadcast %6 : vector<1x1xf32> to vector<1x128xf32>
    %33 = arith.addf %31, %32 : vector<1x128xf32>
    %c0_21 = arith.constant 0 : index
    %c0_22 = arith.constant 0 : index
    %34 = vector.load %arg5[%c0_21, %c0_22] : memref<1x128xf32, #tpu.memory_space<vmem>>, vector<1x128xf32>
    tpu.vector_store %arg5[%c0_21, %c0_22], %33 {strides = array<i32>} : memref<1x128xf32, #tpu.memory_space<vmem>>, vector<1x128xf32>,
    return
  }
  func.func @transform_0(%arg0: i32) -> (i32, i32) {
    %c0_i32 = arith.constant 0 : i32
    %c0_i32_0 = arith.constant 0 : i32
    return %c0_i32, %arg0 : i32, i32
  }
  func.func @transform_1(%arg0: i32) -> (i32, i32, i32) {
    %c0_i32 = arith.constant 0 : i32
    %c0_i32_0 = arith.constant 0 : i32
    %c0_i32_1 = arith.constant 0 : i32
    %c0_i32_2 = arith.constant 0 : i32
    return %c0_i32, %c0_i32_0, %c0_i32_1 : i32, i32, i32
  }
  func.func @transform_2(%arg0: i32) -> (i32, i32) {
    %c0_i32 = arith.constant 0 : i32
    %c0_i32_0 = arith.constant 0 : i32
    %c0_i32_1 = arith.constant 0 : i32
    return %c0_i32, %c0_i32_0 : i32, i32
  }
  func.func @transform_3(%arg0: i32) -> (i32, i32) {
    %c0_i32 = arith.constant 0 : i32
    %c0_i32_0 = arith.constant 0 : i32
    %c0_i32_1 = arith.constant 0 : i32
    return %c0_i32, %c0_i32_0 : i32, i32
  }
  func.func @transform_4(%arg0: i32) -> (i32, i32) {
    %c0_i32 = arith.constant 0 : i32
    %c0_i32_0 = arith.constant 0 : i32
    return %c0_i32, %arg0 : i32, i32
  }
}

module attributes {stable_mosaic.version = 11 : i64} {
  func.func @mlp_kernel(%arg0: i32, %arg1: memref<1x128xf32, #tpu.memory_space<vmem>>, %arg2: memref<2x32x32xf32, #tpu.memory_space<vmem>>, %arg3: memref<32x2xf32, #tpu.memory_space<vmem>>, %arg4: memref<32x4xf32, #tpu.memory_space<vmem>>, %arg5: memref<1x128xf32, #tpu.memory_space<vmem>>) attributes {dimension_semantics = [#tpu.dimension_semantics<parallel>], iteration_bounds = array<i64: 1>, scalar_prefetch = 0 : i64, scratch_operands = 0 : i64, tpu.core_type = #tpu.core_type<tc>, window_params = [{transform_indices = @transform_0, window_bounds = array<i64: 1, 128>}, {pipeline_mode = #tpu.pipeline_mode<synchronous>, transform_indices = @transform_1, window_bounds = array<i64: 2, 32, 32>}, {pipeline_mode = #tpu.pipeline_mode<synchronous>, transform_indices = @transform_2, window_bounds = array<i64: 32, 2>}, {pipeline_mode = #tpu.pipeline_mode<synchronous>, transform_indices = @transform_3, window_bounds = array<i64: 32, 4>}, {transform_indices = @transform_4, window_bounds = array<i64: 1, 128>}]} {
    %c0 = arith.constant 0 : index
    %c0_0 = arith.constant 0 : index
    %0 = vector.load %arg1[%c0, %c0_0] : memref<1x128xf32, #tpu.memory_space<vmem>>, vector<1x128xf32>
    %c0_1 = arith.constant 0 : index
    %c0_2 = arith.constant 0 : index
    %1 = vector.load %arg3[%c0_1, %c0_2] : memref<32x2xf32, #tpu.memory_space<vmem>>, vector<32x1xf32>
    %c0_3 = arith.constant 0 : index
    %c1 = arith.constant 1 : index
    %2 = vector.load %arg3[%c0_3, %c1] : memref<32x2xf32, #tpu.memory_space<vmem>>, vector<32x1xf32>
    %c0_4 = arith.constant 0 : index
    %c0_5 = arith.constant 0 : index
    %3 = vector.load %arg4[%c0_4, %c0_5] : memref<32x4xf32, #tpu.memory_space<vmem>>, vector<32x1xf32>
    %c0_6 = arith.constant 0 : index
    %c1_7 = arith.constant 1 : index
    %4 = vector.load %arg4[%c0_6, %c1_7] : memref<32x4xf32, #tpu.memory_space<vmem>>, vector<32x1xf32>
    %c0_8 = arith.constant 0 : index
    %c2 = arith.constant 2 : index
    %5 = vector.load %arg4[%c0_8, %c2] : memref<32x4xf32, #tpu.memory_space<vmem>>, vector<32x1xf32>
    %c0_9 = arith.constant 0 : index
    %c3 = arith.constant 3 : index
    %6 = vector.load %arg4[%c0_9, %c3] : memref<32x4xf32, #tpu.memory_space<vmem>>, vector<1x1xf32>
    %7 = vector.broadcast %1 : vector<32x1xf32> to vector<32x128xf32>
    %8 = vector.broadcast %0 : vector<1x128xf32> to vector<32x128xf32>
    %9 = arith.mulf %7, %8 : vector<32x128xf32>
    %10 = vector.broadcast %3 : vector<32x1xf32> to vector<32x128xf32>
    %11 = arith.addf %9, %10 : vector<32x128xf32>
    %cst = arith.constant 0.000000e+00 : f32
    %12 = vector.broadcast %cst : f32 to vector<32x128xf32>
    %13 = arith.maximumf %11, %12 : vector<32x128xf32>
    %c0_10 = arith.constant 0 : index
    %c0_11 = arith.constant 0 : index
    %c0_12 = arith.constant 0 : index
    %14 = vector.load %arg2[%c0_10, %c0_11, %c0_12] : memref<2x32x32xf32, #tpu.memory_space<vmem>>, vector<1x32x32xf32>
    %15 = vector.shape_cast %14 : vector<1x32x32xf32> to vector<32x32xf32>
    %cst_13 = arith.constant dense<0.000000e+00> : vector<32x128xf32>
    %16 = tpu.matmul %15, %13, %cst_13 {dimension_numbers = #tpu.dot_dimension_numbers<[1], [0], [0], [1], [0, 0, 1, 1], [], []>} : vector<32x32xf32>, vector<32x128xf32>, vector<32x128xf32> -> vector<32x128xf32>
    %17 = vector.broadcast %4 : vector<32x1xf32> to vector<32x128xf32>
    %18 = arith.addf %16, %17 : vector<32x128xf32>
    %cst_14 = arith.constant 0.000000e+00 : f32
    %19 = vector.broadcast %cst_14 : f32 to vector<32x128xf32>
    %20 = arith.maximumf %18, %19 : vector<32x128xf32>
    %c1_15 = arith.constant 1 : index
    %c0_16 = arith.constant 0 : index
    %c0_17 = arith.constant 0 : index
    %21 = vector.load %arg2[%c1_15, %c0_16, %c0_17] : memref<2x32x32xf32, #tpu.memory_space<vmem>>, vector<1x32x32xf32>
    %22 = vector.shape_cast %21 : vector<1x32x32xf32> to vector<32x32xf32>
    %cst_18 = arith.constant dense<0.000000e+00> : vector<32x128xf32>
    %23 = tpu.matmul %22, %20, %cst_18 {dimension_numbers = #tpu.dot_dimension_numbers<[1], [0], [0], [1], [0, 0, 1, 1], [], []>} : vector<32x32xf32>, vector<32x128xf32>, vector<32x128xf32> -> vector<32x128xf32>
    %24 = vector.broadcast %5 : vector<32x1xf32> to vector<32x128xf32>
    %25 = arith.addf %23, %24 : vector<32x128xf32>
    %cst_19 = arith.constant 0.000000e+00 : f32
    %26 = vector.broadcast %cst_19 : f32 to vector<32x128xf32>
    %27 = arith.maximumf %25, %26 : vector<32x128xf32>
    %28 = vector.broadcast %2 : vector<32x1xf32> to vector<32x128xf32>
    %29 = arith.mulf %28, %27 : vector<32x128xf32>
    %cst_20 = arith.constant dense<0.000000e+00> : vector<128xf32>
    %30 = vector.multi_reduction <add>, %29, %cst_20 [0] : vector<32x128xf32> to vector<128xf32>
    %31 = vector.shape_cast %30 : vector<128xf32> to vector<1x128xf32>
    %32 = vector.broadcast %6 : vector<1x1xf32> to vector<1x128xf32>
    %33 = arith.addf %31, %32 : vector<1x128xf32>
    %c0_21 = arith.constant 0 : index
    %c0_22 = arith.constant 0 : index
    %34 = vector.load %arg5[%c0_21, %c0_22] : memref<1x128xf32, #tpu.memory_space<vmem>>, vector<1x128xf32>
    tpu.vector_store %arg5[%c0_21, %c0_22], %33 {strides = array<i32>} : memref<1x128xf32, #tpu.memory_space<vmem>>, vector<1x128xf32>,
    return
  }
  func.func @transform_0(%arg0: i32) -> (i32, i32) {
    %c0_i32 = arith.constant 0 : i32
    %c0_i32_0 = arith.constant 0 : i32
    return %c0_i32, %arg0 : i32, i32
  }
  func.func @transform_1(%arg0: i32) -> (i32, i32, i32) {
    %c0_i32 = arith.constant 0 : i32
    %c0_i32_0 = arith.constant 0 : i32
    %c0_i32_1 = arith.constant 0 : i32
    %c0_i32_2 = arith.constant 0 : i32
    return %c0_i32, %c0_i32_0, %c0_i32_1 : i32, i32, i32
  }
  func.func @transform_2(%arg0: i32) -> (i32, i32) {
    %c0_i32 = arith.constant 0 : i32
    %c0_i32_0 = arith.constant 0 : i32
    %c0_i32_1 = arith.constant 0 : i32
    return %c0_i32, %c0_i32_0 : i32, i32
  }
  func.func @transform_3(%arg0: i32) -> (i32, i32) {
    %c0_i32 = arith.constant 0 : i32
    %c0_i32_0 = arith.constant 0 : i32
    %c0_i32_1 = arith.constant 0 : i32
    return %c0_i32, %c0_i32_0 : i32, i32
  }
  func.func @transform_4(%arg0: i32) -> (i32, i32) {
    %c0_i32 = arith.constant 0 : i32
    %c0_i32_0 = arith.constant 0 : i32
    return %c0_i32, %arg0 : i32, i32
  }
}

</mosaic_0001>

<llo_original>
// kernel: tpu_custom_call.1
$region0: #{tpu_custom_call.1}
  #allocation0 [shape = 'u32[]', space=smem, size = 0x4, offset = 0x4, fixed_abs, tag = 'smem constant byte address 0x4 - core index']
  #allocation1 [shape = 'u32[72,128]{1,0:T(1,128)}', space=vmem, size = 0x9000, scoped, tag = 'internal scratch']
  %s0 = inlined_call_operand.vmem [shape: f32[1,128], index: 0, kind: input, shape index: {}]
  %s1 = inlined_call_operand.vmem [shape: f32[2,32,32], index: 1, kind: input, shape index: {}]
  %s2 = inlined_call_operand.vmem [shape: f32[32,2], index: 2, kind: input, shape index: {}]
  %s3 = inlined_call_operand.vmem [shape: f32[32,4], index: 3, kind: input, shape index: {}]
  %s4 = inlined_call_operand.hbm [shape: f32[1,128], index: 4, kind: output, shape index: {}]
  %s5 = sld [smem:[#allocation0]]
  $region26: #{tpu_custom_call.1} parent=0
    _
  %s7 = ssub.s32 1, %s5
  %s8 = scalar_select 0, %s7, %s5
  $region1: #{tpu_custom_call.1} parent=0
    #allocation2 [shape = 'u8[512]{0}', space=vmem, size = 0x400, scoped, tag = 'output window, operand 0, single buffered']
    #allocation3 [shape = 's32[1]{0}', space=sflag, size = 0x4, scoped, tag = 'scoped memory for tpu_custom_call.1']
    %9 = vsyncpa [#allocation3], 0
    // Predicated region
    $region2: #{tpu_custom_call.1} parent=1 // pred_check
      _
    $region3: #{tpu_custom_call.1} parent=1 // pred_check_branch
      %11 = sbr.rel (0) target = $region5
    $region4: #{tpu_custom_call.1} parent=1 // pred_region
      _
    $region5: #{tpu_custom_call.1} parent=1 // pred_fallthru
      _
    // Predicated region
    $region6: #{tpu_custom_call.1} parent=1 // pred_check
      _
    $region7: #{tpu_custom_call.1} parent=1 // pred_check_branch
      %13 = sbr.rel (0) target = $region9
    $region8: #{tpu_custom_call.1} parent=1 // pred_region
      _
    $region9: #{tpu_custom_call.1} parent=1 // pred_fallthru
      _
    // Predicated region
    $region10: #{tpu_custom_call.1} parent=1 // pred_check
      _
    $region11: #{tpu_custom_call.1} parent=1 // pred_check_branch
      %15 = sbr.rel (0) target = $region13
    $region12: #{tpu_custom_call.1} parent=1 // pred_region
      _
    $region13: #{tpu_custom_call.1} parent=1 // pred_fallthru
      _
    // Predicated region
    $region14: #{tpu_custom_call.1} parent=1 // pred_check
      _
    $region15: #{tpu_custom_call.1} parent=1 // pred_check_branch
      %17 = sbr.rel (0) target = $region17
    $region16: #{tpu_custom_call.1} parent=1 // pred_region
      _
    $region17: #{tpu_custom_call.1} parent=1 // pred_fallthru
      _
    %v18 = vld [vmem:[%s0] sm:$0x1]
    %v19 = vld [vmem:[%s2] sm:$0xff]
    %v20 = vld [vmem:[%s2 + $0x8] sm:$0xff]
    %v21 = vld [vmem:[%s2 + $0x10] sm:$0xff]
    %v22 = vld [vmem:[%s2 + $0x18] sm:$0xff]
    %v23 = vld [vmem:[%s3] sm:$0xff]
    %v24 = vld [vmem:[%s3 + $0x8] sm:$0xff]
    %v25 = vld [vmem:[%s3 + $0x10] sm:$0xff]
    %v26 = vld [vmem:[%s3 + $0x18] sm:$0xff]
    %v27 = vld [vmem:[%s3] sm:$0x1]
    %29 = vset.pattern.permute.xlu0 0
    %30 = vperm.xlu0 %29, %v19
    %v31 = vpop.permute.xlu0 %30
    %34 = vset.pattern.permute.xlu0 0
    %35 = vperm.xlu0 %34, %v20
    %v36 = vpop.permute.xlu0 %35
    %39 = vset.pattern.permute.xlu0 0
    %40 = vperm.xlu0 %39, %v21
    %v41 = vpop.permute.xlu0 %40
    %44 = vset.pattern.permute.xlu0 0
    %45 = vperm.xlu0 %44, %v22
    %v46 = vpop.permute.xlu0 %45
    %v49 = vperm.slane %v18, 0
    %v51 = vmul.f32 %v31, %v49
    %v52 = vmul.f32 %v36, %v49
    %v53 = vmul.f32 %v41, %v49
    %v54 = vmul.f32 %v46, %v49
    %56 = vset.pattern.permute.xlu0 0
    %57 = vperm.xlu0 %56, %v23
    %v58 = vpop.permute.xlu0 %57
    %61 = vset.pattern.permute.xlu0 0
    %62 = vperm.xlu0 %61, %v24
    %v63 = vpop.permute.xlu0 %62
    %66 = vset.pattern.permute.xlu0 0
    %67 = vperm.xlu0 %66, %v25
    %v68 = vpop.permute.xlu0 %67
    %71 = vset.pattern.permute.xlu0 0
    %72 = vperm.xlu0 %71, %v26
    %v73 = vpop.permute.xlu0 %72
    %v75 = vadd.f32 %v51, %v58
    %v76 = vadd.f32 %v52, %v63
    %v77 = vadd.f32 %v53, %v68
    %v78 = vadd.f32 %v54, %v73
    %v79 = vmax.f32 %v75, 0.0
    %v80 = vmax.f32 %v76, 0.0
    %v81 = vmax.f32 %v77, 0.0
    %v82 = vmax.f32 %v78, 0.0
    %v83 = vld [vmem:[%s1] sm:$0xff]
    %v84 = vld [vmem:[%s1 + $0x8] sm:$0xff]
    %v85 = vld [vmem:[%s1 + $0x10] sm:$0xff]
    %v86 = vld [vmem:[%s1 + $0x18] sm:$0xff]
    %87 = vset.pattern.permute.xlu0 1
    %88 = vperm.xlu0 %87, %v23
    %v89 = vpop.permute.xlu0 %88
    %91 = vset.pattern.permute.xlu0 1
    %92 = vperm.xlu0 %91, %v24
    %v93 = vpop.permute.xlu0 %92
    %95 = vset.pattern.permute.xlu0 1
    %96 = vperm.xlu0 %95, %v25
    %v97 = vpop.permute.xlu0 %96
    %99 = vset.pattern.permute.xlu0 1
    %100 = vperm.xlu0 %99, %v26
    %v101 = vpop.permute.xlu0 %100
    %vm103 = vcmask 261120
    %v105 = vsel %vm103, %v83, 0
    %v108 = vsel %vm103, %v84, 0
    %v111 = vsel %vm103, %v85, 0
    %v114 = vsel %vm103, %v86, 0
    %116 = vmatpush.msra.mxu0 0.0
    %117 = vmatpush.msra.mxu0 0.0
    %118 = vmatpush.msra.mxu0 0.0
    %119 = vmatpush.msra.mxu0 0.0
    %120 = vmatpush.msra.mxu0 0.0
    %121 = vmatpush.msra.mxu0 0.0
    %122 = vmatpush.msra.mxu0 0.0
    %123 = vmatpush.msra.mxu0 0.0
    %124 = vmatpush.msra.mxu0 0.0
    %125 = vmatpush.msra.mxu0 0.0
    %126 = vmatpush.msra.mxu0 0.0
    %127 = vmatpush.msra.mxu0 0.0
    %128 = vmatpush.msra.mxu0 %v82
    %129 = vmatpush.msra.mxu0 %v81
    %130 = vmatpush.msra.mxu0 %v80
    %131 = vmatpush.msra.mxu0 %v79
    %132 = vmatmul.f32.gmra.mxu0 %v105
    %v133 = vpop.f32.mrf.mxu0
    %v134 = vadd.f32 %v89, %v133
    %135 = vmatmul.f32.gmra.mxu0 %v108
    %v136 = vpop.f32.mrf.mxu0
    %v137 = vadd.f32 %v93, %v136
    %138 = vmatmul.f32.gmra.mxu0 %v111
    %v139 = vpop.f32.mrf.mxu0
    %v140 = vadd.f32 %v97, %v139
    %141 = vmatmul.f32.gmra.mxu0 %v114
    %v142 = vpop.f32.mrf.mxu0
    %v143 = vadd.f32 %v101, %v142
    %144 = vdwg.mxu0
    %v145 = vmax.f32 %v134, 0.0
    %v146 = vmax.f32 %v137, 0.0
    %v147 = vmax.f32 %v140, 0.0
    %v148 = vmax.f32 %v143, 0.0
    %s149 = scalar_lea.vmem %s1, 32
    %v150 = vld [vmem:[%s149] sm:$0xff]
    %v151 = vld [vmem:[%s149 + $0x8] sm:$0xff]
    %v152 = vld [vmem:[%s149 + $0x10] sm:$0xff]
    %v153 = vld [vmem:[%s149 + $0x18] sm:$0xff]
    %154 = vset.pattern.permute.xlu0 2
    %155 = vperm.xlu0 %154, %v23
    %v156 = vpop.permute.xlu0 %155
    %158 = vset.pattern.permute.xlu0 2
    %159 = vperm.xlu0 %158, %v24
    %v160 = vpop.permute.xlu0 %159
    %162 = vset.pattern.permute.xlu0 2
    %163 = vperm.xlu0 %162, %v25
    %v164 = vpop.permute.xlu0 %163
    %166 = vset.pattern.permute.xlu0 2
    %167 = vperm.xlu0 %166, %v26
    %v168 = vpop.permute.xlu0 %167
    %v171 = vsel %vm103, %v150, 0
    %v174 = vsel %vm103, %v151, 0
    %v177 = vsel %vm103, %v152, 0
    %v180 = vsel %vm103, %v153, 0
    %182 = vmatpush.msra.mxu0 0.0
    %183 = vmatpush.msra.mxu0 0.0
    %184 = vmatpush.msra.mxu0 0.0
    %185 = vmatpush.msra.mxu0 0.0
    %186 = vmatpush.msra.mxu0 0.0
    %187 = vmatpush.msra.mxu0 0.0
    %188 = vmatpush.msra.mxu0 0.0
    %189 = vmatpush.msra.mxu0 0.0
    %190 = vmatpush.msra.mxu0 0.0
    %191 = vmatpush.msra.mxu0 0.0
    %192 = vmatpush.msra.mxu0 0.0
    %193 = vmatpush.msra.mxu0 0.0
    %194 = vmatpush.msra.mxu0 %v148
    %195 = vmatpush.msra.mxu0 %v147
    %196 = vmatpush.msra.mxu0 %v146
    %197 = vmatpush.msra.mxu0 %v145
    %198 = vmatmul.f32.gmra.mxu0 %v171
    %v199 = vpop.f32.mrf.mxu0
    %v200 = vadd.f32 %v156, %v199
    %201 = vmatmul.f32.gmra.mxu0 %v174
    %v202 = vpop.f32.mrf.mxu0
    %v203 = vadd.f32 %v160, %v202
    %204 = vmatmul.f32.gmra.mxu0 %v177
    %v205 = vpop.f32.mrf.mxu0
    %v206 = vadd.f32 %v164, %v205
    %207 = vmatmul.f32.gmra.mxu0 %v180
    %v208 = vpop.f32.mrf.mxu0
    %v209 = vadd.f32 %v168, %v208
    %210 = vdwg.mxu0
    %v211 = vmax.f32 %v200, 0.0
    %v212 = vmax.f32 %v203, 0.0
    %v213 = vmax.f32 %v206, 0.0
    %v214 = vmax.f32 %v209, 0.0
    %215 = vset.pattern.permute.xlu0 1
    %216 = vperm.xlu0 %215, %v19
    %v217 = vpop.permute.xlu0 %216
    %219 = vset.pattern.permute.xlu0 1
    %220 = vperm.xlu0 %219, %v20
    %v221 = vpop.permute.xlu0 %220
    %223 = vset.pattern.permute.xlu0 1
    %224 = vperm.xlu0 %223, %v21
    %v225 = vpop.permute.xlu0 %224
    %227 = vset.pattern.permute.xlu0 1
    %228 = vperm.xlu0 %227, %v22
    %v229 = vpop.permute.xlu0 %228
    %v231 = vmul.f32 %v217, %v211
    %v232 = vmul.f32 %v221, %v212
    %v233 = vmul.f32 %v225, %v213
    %v234 = vmul.f32 %v229, %v214
    %v235 = vadd.f32 %v231, %v232
    %v236 = vadd.f32 %v235, %v233
    %v237 = vadd.f32 %v236, %v234
    %v238 = vrot.slane %v237, 4
    %v239 = vadd.f32 %v237, %v238
    %v240 = vrot.slane %v239, 2
    %v241 = vadd.f32 %v239, %v240
    %v242 = vrot.slane %v241, 1
    %v243 = vadd.f32 %v241, %v242
    %245 = vset.pattern.permute.xlu0 3
    %246 = vperm.xlu0 %245, %v27
    %v247 = vpop.permute.xlu0 %246
    %v249 = vadd.f32 %v243, %v247
    %250 = vst [vmem:[#allocation2] sm:$0x1] %v249
    // Predicated region
    $region18: #{tpu_custom_call.1} parent=1 // pred_check
      _
    $region19: #{tpu_custom_call.1} parent=1 // pred_check_branch
      %252 = sbr.rel (0) target = $region21
    $region20: #{tpu_custom_call.1} parent=1 // pred_region
      %254 = vsyncadd [#allocation3], 0
      %s256 = sshll.u32 [#allocation2], 4
      %s257 = int_to_ptr.vmem [resolvable:$true] %s256
      %s258 = sshll.u32 %s4, 4
      %s259 = int_to_ptr.hbm [resolvable:$true] %s258
      %261 = dma.vmem_to_hbm [thread:$0]  %s257, 16, %s259, [#allocation3]
    $region21: #{tpu_custom_call.1} parent=1 // pred_fallthru
      _
    // Predicated region
    $region22: #{tpu_custom_call.1} parent=1 // pred_check
      _
    $region23: #{tpu_custom_call.1} parent=1 // pred_check_branch
      %263 = sbr.rel (0) target = $region25
    $region24: #{tpu_custom_call.1} parent=1 // pred_region
      %265 = dma.done [#allocation3], 16
    $region25: #{tpu_custom_call.1} parent=1 // pred_fallthru
      _
    %266 = vsyncpa [#allocation3], 1

// kernel: tpu_custom_call.1
$region0: #{tpu_custom_call.1}
  #allocation0 [shape = 'u32[]', space=smem, size = 0x4, offset = 0x4, fixed_abs, tag = 'smem constant byte address 0x4 - core index']
  #allocation1 [shape = 'u32[72,128]{1,0:T(1,128)}', space=vmem, size = 0x9000, scoped, tag = 'internal scratch']
  %s0 = inlined_call_operand.vmem [shape: f32[1,128], index: 0, kind: input, shape index: {}]
  %s1 = inlined_call_operand.vmem [shape: f32[2,32,32], index: 1, kind: input, shape index: {}]
  %s2 = inlined_call_operand.vmem [shape: f32[32,2], index: 2, kind: input, shape index: {}]
  %s3 = inlined_call_operand.vmem [shape: f32[32,4], index: 3, kind: input, shape index: {}]
  %s4 = inlined_call_operand.hbm [shape: f32[1,128], index: 4, kind: output, shape index: {}]
  %s5 = sld [smem:[#allocation0]]
  $region26: #{tpu_custom_call.1} parent=0
    _
  %s7 = ssub.s32 1, %s5
  %s8 = scalar_select 0, %s7, %s5
  $region1: #{tpu_custom_call.1} parent=0
    #allocation2 [shape = 'u8[512]{0}', space=vmem, size = 0x400, scoped, tag = 'output window, operand 0, single buffered']
    #allocation3 [shape = 's32[1]{0}', space=sflag, size = 0x4, scoped, tag = 'scoped memory for tpu_custom_call.1']
    %9 = vsyncpa [#allocation3], 0
    // Predicated region
    $region2: #{tpu_custom_call.1} parent=1 // pred_check
      _
    $region3: #{tpu_custom_call.1} parent=1 // pred_check_branch
      %11 = sbr.rel (0) target = $region5
    $region4: #{tpu_custom_call.1} parent=1 // pred_region
      _
    $region5: #{tpu_custom_call.1} parent=1 // pred_fallthru
      _
    // Predicated region
    $region6: #{tpu_custom_call.1} parent=1 // pred_check
      _
    $region7: #{tpu_custom_call.1} parent=1 // pred_check_branch
      %13 = sbr.rel (0) target = $region9
    $region8: #{tpu_custom_call.1} parent=1 // pred_region
      _
    $region9: #{tpu_custom_call.1} parent=1 // pred_fallthru
      _
    // Predicated region
    $region10: #{tpu_custom_call.1} parent=1 // pred_check
      _
    $region11: #{tpu_custom_call.1} parent=1 // pred_check_branch
      %15 = sbr.rel (0) target = $region13
    $region12: #{tpu_custom_call.1} parent=1 // pred_region
      _
    $region13: #{tpu_custom_call.1} parent=1 // pred_fallthru
      _
    // Predicated region
    $region14: #{tpu_custom_call.1} parent=1 // pred_check
      _
    $region15: #{tpu_custom_call.1} parent=1 // pred_check_branch
      %17 = sbr.rel (0) target = $region17
    $region16: #{tpu_custom_call.1} parent=1 // pred_region
      _
    $region17: #{tpu_custom_call.1} parent=1 // pred_fallthru
      _
    %v18 = vld [vmem:[%s0] sm:$0x1]
    %v19 = vld [vmem:[%s2] sm:$0xff]
    %v20 = vld [vmem:[%s2 + $0x8] sm:$0xff]
    %v21 = vld [vmem:[%s2 + $0x10] sm:$0xff]
    %v22 = vld [vmem:[%s2 + $0x18] sm:$0xff]
    %v23 = vld [vmem:[%s3] sm:$0xff]
    %v24 = vld [vmem:[%s3 + $0x8] sm:$0xff]
    %v25 = vld [vmem:[%s3 + $0x10] sm:$0xff]
    %v26 = vld [vmem:[%s3 + $0x18] sm:$0xff]
    %v27 = vld [vmem:[%s3] sm:$0x1]
    %29 = vset.pattern.permute.xlu0 0
    %30 = vperm.xlu0 %29, %v19
    %v31 = vpop.permute.xlu0 %30
    %34 = vset.pattern.permute.xlu0 0
    %35 = vperm.xlu0 %34, %v20
    %v36 = vpop.permute.xlu0 %35
    %39 = vset.pattern.permute.xlu0 0
    %40 = vperm.xlu0 %39, %v21
    %v41 = vpop.permute.xlu0 %40
    %44 = vset.pattern.permute.xlu0 0
    %45 = vperm.xlu0 %44, %v22
    %v46 = vpop.permute.xlu0 %45
    %v49 = vperm.slane %v18, 0
    %v51 = vmul.f32 %v31, %v49
    %v52 = vmul.f32 %v36, %v49
    %v53 = vmul.f32 %v41, %v49
    %v54 = vmul.f32 %v46, %v49
    %56 = vset.pattern.permute.xlu0 0
    %57 = vperm.xlu0 %56, %v23
    %v58 = vpop.permute.xlu0 %57
    %61 = vset.pattern.permute.xlu0 0
    %62 = vperm.xlu0 %61, %v24
    %v63 = vpop.permute.xlu0 %62
    %66 = vset.pattern.permute.xlu0 0
    %67 = vperm.xlu0 %66, %v25
    %v68 = vpop.permute.xlu0 %67
    %71 = vset.pattern.permute.xlu0 0
    %72 = vperm.xlu0 %71, %v26
    %v73 = vpop.permute.xlu0 %72
    %v75 = vadd.f32 %v51, %v58
    %v76 = vadd.f32 %v52, %v63
    %v77 = vadd.f32 %v53, %v68
    %v78 = vadd.f32 %v54, %v73
    %v79 = vmax.f32 %v75, 0.0
    %v80 = vmax.f32 %v76, 0.0
    %v81 = vmax.f32 %v77, 0.0
    %v82 = vmax.f32 %v78, 0.0
    %v83 = vld [vmem:[%s1] sm:$0xff]
    %v84 = vld [vmem:[%s1 + $0x8] sm:$0xff]
    %v85 = vld [vmem:[%s1 + $0x10] sm:$0xff]
    %v86 = vld [vmem:[%s1 + $0x18] sm:$0xff]
    %87 = vset.pattern.permute.xlu0 1
    %88 = vperm.xlu0 %87, %v23
    %v89 = vpop.permute.xlu0 %88
    %91 = vset.pattern.permute.xlu0 1
    %92 = vperm.xlu0 %91, %v24
    %v93 = vpop.permute.xlu0 %92
    %95 = vset.pattern.permute.xlu0 1
    %96 = vperm.xlu0 %95, %v25
    %v97 = vpop.permute.xlu0 %96
    %99 = vset.pattern.permute.xlu0 1
    %100 = vperm.xlu0 %99, %v26
    %v101 = vpop.permute.xlu0 %100
    %vm103 = vcmask 261120
    %v105 = vsel %vm103, %v83, 0
    %v108 = vsel %vm103, %v84, 0
    %v111 = vsel %vm103, %v85, 0
    %v114 = vsel %vm103, %v86, 0
    %116 = vmatpush.msra.mxu0 0.0
    %117 = vmatpush.msra.mxu0 0.0
    %118 = vmatpush.msra.mxu0 0.0
    %119 = vmatpush.msra.mxu0 0.0
    %120 = vmatpush.msra.mxu0 0.0
    %121 = vmatpush.msra.mxu0 0.0
    %122 = vmatpush.msra.mxu0 0.0
    %123 = vmatpush.msra.mxu0 0.0
    %124 = vmatpush.msra.mxu0 0.0
    %125 = vmatpush.msra.mxu0 0.0
    %126 = vmatpush.msra.mxu0 0.0
    %127 = vmatpush.msra.mxu0 0.0
    %128 = vmatpush.msra.mxu0 %v82
    %129 = vmatpush.msra.mxu0 %v81
    %130 = vmatpush.msra.mxu0 %v80
    %131 = vmatpush.msra.mxu0 %v79
    %132 = vmatmul.f32.gmra.mxu0 %v105
    %v133 = vpop.f32.mrf.mxu0
    %v134 = vadd.f32 %v89, %v133
    %135 = vmatmul.f32.gmra.mxu0 %v108
    %v136 = vpop.f32.mrf.mxu0
    %v137 = vadd.f32 %v93, %v136
    %138 = vmatmul.f32.gmra.mxu0 %v111
    %v139 = vpop.f32.mrf.mxu0
    %v140 = vadd.f32 %v97, %v139
    %141 = vmatmul.f32.gmra.mxu0 %v114
    %v142 = vpop.f32.mrf.mxu0
    %v143 = vadd.f32 %v101, %v142
    %144 = vdwg.mxu0
    %v145 = vmax.f32 %v134, 0.0
    %v146 = vmax.f32 %v137, 0.0
    %v147 = vmax.f32 %v140, 0.0
    %v148 = vmax.f32 %v143, 0.0
    %s149 = scalar_lea.vmem %s1, 32
    %v150 = vld [vmem:[%s149] sm:$0xff]
    %v151 = vld [vmem:[%s149 + $0x8] sm:$0xff]
    %v152 = vld [vmem:[%s149 + $0x10] sm:$0xff]
    %v153 = vld [vmem:[%s149 + $0x18] sm:$0xff]
    %154 = vset.pattern.permute.xlu0 2
    %155 = vperm.xlu0 %154, %v23
    %v156 = vpop.permute.xlu0 %155
    %158 = vset.pattern.permute.xlu0 2
    %159 = vperm.xlu0 %158, %v24
    %v160 = vpop.permute.xlu0 %159
    %162 = vset.pattern.permute.xlu0 2
    %163 = vperm.xlu0 %162, %v25
    %v164 = vpop.permute.xlu0 %163
    %166 = vset.pattern.permute.xlu0 2
    %167 = vperm.xlu0 %166, %v26
    %v168 = vpop.permute.xlu0 %167
    %v171 = vsel %vm103, %v150, 0
    %v174 = vsel %vm103, %v151, 0
    %v177 = vsel %vm103, %v152, 0
    %v180 = vsel %vm103, %v153, 0
    %182 = vmatpush.msra.mxu0 0.0
    %183 = vmatpush.msra.mxu0 0.0
    %184 = vmatpush.msra.mxu0 0.0
    %185 = vmatpush.msra.mxu0 0.0
    %186 = vmatpush.msra.mxu0 0.0
    %187 = vmatpush.msra.mxu0 0.0
    %188 = vmatpush.msra.mxu0 0.0
    %189 = vmatpush.msra.mxu0 0.0
    %190 = vmatpush.msra.mxu0 0.0
    %191 = vmatpush.msra.mxu0 0.0
    %192 = vmatpush.msra.mxu0 0.0
    %193 = vmatpush.msra.mxu0 0.0
    %194 = vmatpush.msra.mxu0 %v148
    %195 = vmatpush.msra.mxu0 %v147
    %196 = vmatpush.msra.mxu0 %v146
    %197 = vmatpush.msra.mxu0 %v145
    %198 = vmatmul.f32.gmra.mxu0 %v171
    %v199 = vpop.f32.mrf.mxu0
    %v200 = vadd.f32 %v156, %v199
    %201 = vmatmul.f32.gmra.mxu0 %v174
    %v202 = vpop.f32.mrf.mxu0
    %v203 = vadd.f32 %v160, %v202
    %204 = vmatmul.f32.gmra.mxu0 %v177
    %v205 = vpop.f32.mrf.mxu0
    %v206 = vadd.f32 %v164, %v205
    %207 = vmatmul.f32.gmra.mxu0 %v180
    %v208 = vpop.f32.mrf.mxu0
    %v209 = vadd.f32 %v168, %v208
    %210 = vdwg.mxu0
    %v211 = vmax.f32 %v200, 0.0
    %v212 = vmax.f32 %v203, 0.0
    %v213 = vmax.f32 %v206, 0.0
    %v214 = vmax.f32 %v209, 0.0
    %215 = vset.pattern.permute.xlu0 1
    %216 = vperm.xlu0 %215, %v19
    %v217 = vpop.permute.xlu0 %216
    %219 = vset.pattern.permute.xlu0 1
    %220 = vperm.xlu0 %219, %v20
    %v221 = vpop.permute.xlu0 %220
    %223 = vset.pattern.permute.xlu0 1
    %224 = vperm.xlu0 %223, %v21
    %v225 = vpop.permute.xlu0 %224
    %227 = vset.pattern.permute.xlu0 1
    %228 = vperm.xlu0 %227, %v22
    %v229 = vpop.permute.xlu0 %228
    %v231 = vmul.f32 %v217, %v211
    %v232 = vmul.f32 %v221, %v212
    %v233 = vmul.f32 %v225, %v213
    %v234 = vmul.f32 %v229, %v214
    %v235 = vadd.f32 %v231, %v232
    %v236 = vadd.f32 %v235, %v233
    %v237 = vadd.f32 %v236, %v234
    %v238 = vrot.slane %v237, 4
    %v239 = vadd.f32 %v237, %v238
    %v240 = vrot.slane %v239, 2
    %v241 = vadd.f32 %v239, %v240
    %v242 = vrot.slane %v241, 1
    %v243 = vadd.f32 %v241, %v242
    %245 = vset.pattern.permute.xlu0 3
    %246 = vperm.xlu0 %245, %v27
    %v247 = vpop.permute.xlu0 %246
    %v249 = vadd.f32 %v243, %v247
    %250 = vst [vmem:[#allocation2] sm:$0x1] %v249
    // Predicated region
    $region18: #{tpu_custom_call.1} parent=1 // pred_check
      _
    $region19: #{tpu_custom_call.1} parent=1 // pred_check_branch
      %252 = sbr.rel (0) target = $region21
    $region20: #{tpu_custom_call.1} parent=1 // pred_region
      %254 = vsyncadd [#allocation3], 0
      %s256 = sshll.u32 [#allocation2], 4
      %s257 = int_to_ptr.vmem [resolvable:$true] %s256
      %s258 = sshll.u32 %s4, 4
      %s259 = int_to_ptr.hbm [resolvable:$true] %s258
      %261 = dma.vmem_to_hbm [thread:$0]  %s257, 16, %s259, [#allocation3]
    $region21: #{tpu_custom_call.1} parent=1 // pred_fallthru
      _
    // Predicated region
    $region22: #{tpu_custom_call.1} parent=1 // pred_check
      _
    $region23: #{tpu_custom_call.1} parent=1 // pred_check_branch
      %263 = sbr.rel (0) target = $region25
    $region24: #{tpu_custom_call.1} parent=1 // pred_region
      %265 = dma.done [#allocation3], 16
    $region25: #{tpu_custom_call.1} parent=1 // pred_fallthru
      _
    %266 = vsyncpa [#allocation3], 1

</llo_original>
